<compile_context>
chip_gen: v7x
topology: tpu7x:2x2x1
jax: 0.10.0
libtpu: 0.0.40
codegen_flags: <defaults>
</compile_context>

<pallas_src>
import functools

import jax
import jax.numpy as jnp
from jax.experimental import pallas as pl
from jax.experimental.pallas import tpu as pltpu


def _round_up(x: int, m: int) -> int:
    return ((x + m - 1) // m) * m


# --------------------------------------------------------------------------- #
# Kernel
# --------------------------------------------------------------------------- #
def fcn_kernel(x_ref, w1_ref, b1_ref, w2_ref, b2_ref, o_ref):
    # Layer 1: Linear + ReLU.
    # bf16 operands feed the MXU at native rate; accumulation is f32.
    x = x_ref[...].astype(jnp.bfloat16)
    h = jnp.dot(x, w1_ref[...], preferred_element_type=jnp.float32) + b1_ref[...]
    # ReLU in f32 on the VPU, then cast once so the second matmul gets a bf16 LHS.
    h = jnp.maximum(h, 0.0).astype(jnp.bfloat16)

    # Layer 2: Linear + Sigmoid (sigmoid -> single EUP transcendental), f32 epilogue.
    y = jnp.dot(h, w2_ref[...], preferred_element_type=jnp.float32) + b2_ref[...]
    o_ref[...] = jax.nn.sigmoid(y).astype(o_ref.dtype)


# --------------------------------------------------------------------------- #
# One-time parameter preparation (hoisted out of the per-call path)
# --------------------------------------------------------------------------- #
def prepare_fcn_params(w1, b1, w2, b2, *, param_dtype=jnp.bfloat16):
    """Pad parameters to lane-aligned (multiple-of-128) shapes once, at init.

    w1 : (I, H), b1 : (H,), w2 : (H, O), b2 : (O,)
    Returns (padded_params, dims) where dims = (I, H, O) (static ints).
    Weights are stored in bf16 (MXU operands); biases stay f32 (f32 epilogue).
    """
    I, H = w1.shape
    O = w2.shape[1]
    I_p, H_p, O_p = _round_up(I, 128), _round_up(H, 128), _round_up(O, 128)

    w1p = jnp.zeros((I_p, H_p), param_dtype).at[:I, :H].set(w1.astype(param_dtype))
    b1p = jnp.zeros((1, H_p), jnp.float32).at[0, :H].set(b1.astype(jnp.float32))
    w2p = jnp.zeros((H_p, O_p), param_dtype).at[:H, :O].set(w2.astype(param_dtype))
    b2p = jnp.zeros((1, O_p), jnp.float32).at[0, :O].set(b2.astype(jnp.float32))
    return (w1p, b1p, w2p, b2p), (I, H, O)


# --------------------------------------------------------------------------- #
# Forward
# --------------------------------------------------------------------------- #
@functools.partial(jax.jit, static_argnames=("dims", "block_b"))
def fcn_forward(x, w1p, b1p, w2p, b2p, *, dims, block_b: int = 512):
    """2-layer MLP forward, fully fused in a single Pallas kernel.

    x : (B, I) — unpadded input.
    w1p/b1p/w2p/b2p : padded params from prepare_fcn_params.
    dims : (I, H, O) original feature sizes (static).
    """
    B, I = x.shape
    _, H, O = dims
    I_p, H_p = w1p.shape
    O_p = w2p.shape[1]

    # --- Batch tile ------------------------------------------------------
    # Sublane-aligned; default 512 rows (matches v6e/v7x 256-wide MXU M dim).
    TB = min(block_b, _round_up(B, 8))
    # Guarantee >=2 grid steps on the "parallel" axis when possible so both
    # v7x TensorCores get work.
    if _round_up(B, TB) // TB < 2 and TB >= 16:
        TB = _round_up((TB + 1) // 2, 8)
    B_p = _round_up(B, TB)
    num_b_tiles = B_p // TB

    dt = x.dtype
    x_elt = jnp.dtype(dt).itemsize
    w_elt = jnp.dtype(w1p.dtype).itemsize

    # Pad x only if its static shape actually requires it.
    if (B_p, I_p) != (B, I):
        xp = jnp.zeros((B_p, I_p), dt).at[:B, :I].set(x)
    else:
        xp = x

    # --- VMEM budget (actual buffer counts) -------------------------------
    vmem_bytes = (
        2 * TB * I_p * x_elt                      # double-buffered x tile
        + 2 * TB * O_p * x_elt                    # double-buffered out tile
        + I_p * H_p * w_elt + H_p * 4             # single-buffered w1 + b1
        + H_p * O_p * w_elt + O_p * 4             # single-buffered w2 + b2
        + TB * H_p * (4 + 2)                      # in-flight hidden act (f32 + bf16)
    )
    try:
        vmem_cap = pltpu.get_tpu_info().vmem_capacity_bytes
    except Exception:
        vmem_cap = 64 << 20                       # conservative (v7x per-TC)
    vmem_limit = int(min(max(int(1.5 * vmem_bytes), 32 << 20), int(0.75 * vmem_cap)))

    cost = pl.CostEstimate(
        flops=2 * B_p * (I_p * H_p + H_p * O_p),
        transcendentals=B_p * O_p,
        bytes_accessed=(
            B_p * I_p * x_elt
            + (I_p * H_p + H_p * O_p) * w_elt
            + (H_p + O_p) * 4
            + B_p * O_p * x_elt
        ),
    )

    resident = dict(pipeline_mode=pl.Buffered(1))  # weights never change across steps

    out_p = pl.pallas_call(
        fcn_kernel,
        out_shape=jax.ShapeDtypeStruct((B_p, O_p), dt),
        grid_spec=pltpu.PrefetchScalarGridSpec(
            num_scalar_prefetch=0,
            grid=(num_b_tiles,),
            in_specs=[
                # x: streamed (double-buffered) over the batch grid axis.
                pl.BlockSpec((TB, I_p), lambda i: (i, 0)),
                # Weights / biases: constant block index -> resident in VMEM,
                # DMA'd once, single-buffered.
                pl.BlockSpec((I_p, H_p), lambda i: (0, 0), **resident),
                pl.BlockSpec((1, H_p), lambda i: (0, 0), **resident),
                pl.BlockSpec((H_p, O_p), lambda i: (0, 0), **resident),
                pl.BlockSpec((1, O_p), lambda i: (0, 0), **resident),
            ],
            # Lane-dense (multiple-of-128) output tile, streamed over batch.
            out_specs=pl.BlockSpec((TB, O_p), lambda i: (i, 0)),
        ),
        compiler_params=pltpu.CompilerParams(
            dimension_semantics=("parallel",),     # batch tiles shard across TCs
            vmem_limit_bytes=vmem_limit,
        ),
        cost_estimate=cost,
    )(xp, w1p, b1p, w2p, b2p)

    # Strip the padding.
    return out_p[:B, :O]


# --------------------------------------------------------------------------- #
# References
# --------------------------------------------------------------------------- #
def fcn_reference_f32(x, w1, b1, w2, b2):
    h = jnp.maximum(x @ w1 + b1, 0.0)
    return jax.nn.sigmoid(h @ w2 + b2)


def fcn_reference_bf16(x, w1, b1, w2, b2):
    """Mirrors the kernel's numerics: bf16 MXU operands, f32 accumulation/epilogue."""
    bf = jnp.bfloat16
    h = jnp.dot(x.astype(bf), w1.astype(bf), preferred_element_type=jnp.float32) + b1
    h = jnp.maximum(h, 0.0).astype(bf)
    y = jnp.dot(h, w2.astype(bf), preferred_element_type=jnp.float32) + b2
    return jax.nn.sigmoid(y)


if __name__ == "__main__":
    # Small shapes consistent with the module's forward.
    batch, input_size, hidden_dim, output_size = 8, 16, 32, 8

    key = jax.random.PRNGKey(0)
    kx, kw1, kb1, kw2, kb2 = jax.random.split(key, 5)

    x = jax.random.normal(kx, (batch, input_size), dtype=jnp.float32)

    # Deterministic parameter init (uniform, like PyTorch's default Linear init,
    # scale 1/sqrt(fan_in)), stored as (in_features, out_features).
    lim1 = 1.0 / jnp.sqrt(input_size)
    lim2 = 1.0 / jnp.sqrt(hidden_dim)
    w1 = jax.random.uniform(kw1, (input_size, hidden_dim), jnp.float32, -lim1, lim1)
    b1 = jax.random.uniform(kb1, (hidden_dim,), jnp.float32, -lim1, lim1)
    w2 = jax.random.uniform(kw2, (hidden_dim, output_size), jnp.float32, -lim2, lim2)
    b2 = jax.random.uniform(kb2, (output_size,), jnp.float32, -lim2, lim2)

    # One-time (init-path) parameter padding, off the per-call hot path.
    (w1p, b1p, w2p, b2p), dims = prepare_fcn_params(w1, b1, w2, b2)

    out = fcn_forward(x, w1p, b1p, w2p, b2p, dims=dims)
    jax.block_until_ready(out)

    assert out.shape == (batch, output_size)
    # Tight check against a reference that mirrors the kernel's bf16-operand numerics.
    ref_bf16 = fcn_reference_bf16(x, w1, b1, w2, b2)
    assert jnp.allclose(out, ref_bf16, atol=2e-3, rtol=2e-3)
    # Looser check against the pure-f32 module semantics (bf16 operand drift only).
    ref_f32 = fcn_reference_f32(x, w1, b1, w2, b2)
    assert jnp.allclose(out, ref_f32, atol=3e-2, rtol=3e-2)

    print("KERNEL_OK")
</pallas_src>

<mosaic_0001>
module attributes {stable_mosaic.version = 11 : i64} {
  func.func @fcn_kernel(%arg0: i32, %arg1: memref<8x128xf32, #tpu.memory_space<vmem>>, %arg2: memref<128x128xbf16, #tpu.memory_space<vmem>>, %arg3: memref<1x128xf32, #tpu.memory_space<vmem>>, %arg4: memref<128x128xbf16, #tpu.memory_space<vmem>>, %arg5: memref<1x128xf32, #tpu.memory_space<vmem>>, %arg6: memref<8x128xf32, #tpu.memory_space<vmem>>) attributes {dimension_semantics = [#tpu.dimension_semantics<parallel>], iteration_bounds = array<i64: 1>, scalar_prefetch = 0 : i64, scratch_operands = 0 : i64, tpu.core_type = #tpu.core_type<tc>, window_params = [{transform_indices = @transform_0, window_bounds = array<i64: 8, 128>}, {pipeline_mode = #tpu.pipeline_mode<synchronous>, transform_indices = @transform_1, window_bounds = array<i64: 128, 128>}, {pipeline_mode = #tpu.pipeline_mode<synchronous>, transform_indices = @transform_2, window_bounds = array<i64: 1, 128>}, {pipeline_mode = #tpu.pipeline_mode<synchronous>, transform_indices = @transform_3, window_bounds = array<i64: 128, 128>}, {pipeline_mode = #tpu.pipeline_mode<synchronous>, transform_indices = @transform_4, window_bounds = array<i64: 1, 128>}, {transform_indices = @transform_5, window_bounds = array<i64: 8, 128>}]} {
    %c0 = arith.constant 0 : index
    %c0_0 = arith.constant 0 : index
    %0 = vector.load %arg1[%c0, %c0_0] : memref<8x128xf32, #tpu.memory_space<vmem>>, vector<8x128xf32>
    %1 = arith.truncf %0 : vector<8x128xf32> to vector<8x128xbf16>
    %c0_1 = arith.constant 0 : index
    %c0_2 = arith.constant 0 : index
    %2 = vector.load %arg2[%c0_1, %c0_2] : memref<128x128xbf16, #tpu.memory_space<vmem>>, vector<128x128xbf16>
    %cst = arith.constant dense<0.000000e+00> : vector<8x128xf32>
    %3 = tpu.matmul %1, %2, %cst {dimension_numbers = #tpu.dot_dimension_numbers<[1], [0], [0], [1], [0, 0, 1, 1], [], []>} : vector<8x128xbf16>, vector<128x128xbf16>, vector<8x128xf32> -> vector<8x128xf32>
    %c0_3 = arith.constant 0 : index
    %c0_4 = arith.constant 0 : index
    %4 = vector.load %arg3[%c0_3, %c0_4] : memref<1x128xf32, #tpu.memory_space<vmem>>, vector<1x128xf32>
    %5 = vector.broadcast %4 : vector<1x128xf32> to vector<8x128xf32>
    %6 = arith.addf %3, %5 : vector<8x128xf32>
    %cst_5 = arith.constant 0.000000e+00 : f32
    %7 = vector.broadcast %cst_5 : f32 to vector<8x128xf32>
    %8 = arith.maximumf %6, %7 : vector<8x128xf32>
    %9 = arith.truncf %8 : vector<8x128xf32> to vector<8x128xbf16>
    %c0_6 = arith.constant 0 : index
    %c0_7 = arith.constant 0 : index
    %10 = vector.load %arg4[%c0_6, %c0_7] : memref<128x128xbf16, #tpu.memory_space<vmem>>, vector<128x128xbf16>
    %cst_8 = arith.constant dense<0.000000e+00> : vector<8x128xf32>
    %11 = tpu.matmul %9, %10, %cst_8 {dimension_numbers = #tpu.dot_dimension_numbers<[1], [0], [0], [1], [0, 0, 1, 1], [], []>} : vector<8x128xbf16>, vector<128x128xbf16>, vector<8x128xf32> -> vector<8x128xf32>
    %c0_9 = arith.constant 0 : index
    %c0_10 = arith.constant 0 : index
    %12 = vector.load %arg5[%c0_9, %c0_10] : memref<1x128xf32, #tpu.memory_space<vmem>>, vector<1x128xf32>
    %13 = vector.broadcast %12 : vector<1x128xf32> to vector<8x128xf32>
    %14 = arith.addf %11, %13 : vector<8x128xf32>
    %15 = arith.negf %14 : vector<8x128xf32>
    %16 = math.exp %15 : vector<8x128xf32>
    %cst_11 = arith.constant 1.000000e+00 : f32
    %17 = vector.broadcast %cst_11 : f32 to vector<8x128xf32>
    %18 = arith.addf %17, %16 : vector<8x128xf32>
    %19 = arith.divf %17, %18 : vector<8x128xf32>
    %c0_12 = arith.constant 0 : index
    %c0_13 = arith.constant 0 : index
    %20 = vector.load %arg6[%c0_12, %c0_13] : memref<8x128xf32, #tpu.memory_space<vmem>>, vector<8x128xf32>
    tpu.vector_store %arg6[%c0_12, %c0_13], %19 {strides = array<i32>} : memref<8x128xf32, #tpu.memory_space<vmem>>, vector<8x128xf32>,
    return
  }
  func.func @transform_0(%arg0: i32) -> (i32, i32) {
    %c0_i32 = arith.constant 0 : i32
    %c0_i32_0 = arith.constant 0 : i32
    return %arg0, %c0_i32 : i32, i32
  }
  func.func @transform_1(%arg0: i32) -> (i32, i32) {
    %c0_i32 = arith.constant 0 : i32
    %c0_i32_0 = arith.constant 0 : i32
    %c0_i32_1 = arith.constant 0 : i32
    return %c0_i32, %c0_i32_0 : i32, i32
  }
  func.func @transform_2(%arg0: i32) -> (i32, i32) {
    %c0_i32 = arith.constant 0 : i32
    %c0_i32_0 = arith.constant 0 : i32
    %c0_i32_1 = arith.constant 0 : i32
    return %c0_i32, %c0_i32_0 : i32, i32
  }
  func.func @transform_3(%arg0: i32) -> (i32, i32) {
    %c0_i32 = arith.constant 0 : i32
    %c0_i32_0 = arith.constant 0 : i32
    %c0_i32_1 = arith.constant 0 : i32
    return %c0_i32, %c0_i32_0 : i32, i32
  }
  func.func @transform_4(%arg0: i32) -> (i32, i32) {
    %c0_i32 = arith.constant 0 : i32
    %c0_i32_0 = arith.constant 0 : i32
    %c0_i32_1 = arith.constant 0 : i32
    return %c0_i32, %c0_i32_0 : i32, i32
  }
  func.func @transform_5(%arg0: i32) -> (i32, i32) {
    %c0_i32 = arith.constant 0 : i32
    %c0_i32_0 = arith.constant 0 : i32
    return %arg0, %c0_i32 : i32, i32
  }
}

</mosaic_0001>

<llo_original>
// kernel: fcn_forward.1
$region0: #{fcn_forward.1}
  #allocation0 [shape = 'u32[]', space=smem, size = 0x4, offset = 0x4, fixed_abs, tag = 'smem constant byte address 0x4 - core index']
  #allocation1 [shape = 'u32[144,128]{1,0:T(1,128)}', space=vmem, size = 0x12000, scoped, tag = 'internal scratch']
  %s0 = inlined_call_operand.vmem [shape: f32[8,128], index: 0, kind: input, shape index: {}]
  %s1 = inlined_call_operand.hbm [shape: bf16[128,128], index: 1, kind: input, shape index: {}]
  %s2 = inlined_call_operand.vmem [shape: f32[1,128], index: 2, kind: input, shape index: {}]
  %s3 = inlined_call_operand.hbm [shape: bf16[128,128], index: 3, kind: input, shape index: {}]
  %s4 = inlined_call_operand.vmem [shape: f32[1,128], index: 4, kind: input, shape index: {}]
  %s5 = inlined_call_operand.hbm [shape: f32[8,128], index: 5, kind: output, shape index: {}]
  %s6 = sld [smem:[#allocation0]]
  $region38: #{fcn_forward.1} parent=0
    _
  %s8 = ssub.s32 1, %s6
  %s9 = scalar_select 0, %s8, %s6
  $region1: #{fcn_forward.1} parent=0
    #allocation2 [shape = 'u8[32768]{0}', space=vmem, size = 0x8000, scoped, tag = 'input window, operand 1, single buffered']
    #allocation3 [shape = 's32[1]{0}', space=sflag, size = 0x4, scoped, tag = 'scoped memory for fcn_forward.1']
    #allocation4 [shape = 's32[1]{0}', space=sflag, size = 0x4, scoped, tag = 'scoped memory for fcn_forward.1']
    #allocation5 [shape = 'u8[32768]{0}', space=vmem, size = 0x8000, scoped, tag = 'input window, operand 3, single buffered']
    #allocation6 [shape = 's32[1]{0}', space=sflag, size = 0x4, scoped, tag = 'scoped memory for fcn_forward.1']
    #allocation7 [shape = 'u8[4096]{0}', space=vmem, size = 0x1000, scoped, tag = 'output window, operand 0, single buffered']
    %10 = vsyncpa [#allocation3], 0
    %11 = vsyncpa [#allocation6], 0
    %12 = vsyncpa [#allocation4], 0
    // Predicated region
    $region2: #{fcn_forward.1} parent=1 // pred_check
      _
    $region3: #{fcn_forward.1} parent=1 // pred_check_branch
      %14 = sbr.rel (0) target = $region5
    $region4: #{fcn_forward.1} parent=1 // pred_region
      _
    $region5: #{fcn_forward.1} parent=1 // pred_fallthru
      _
    // Predicated region
    $region6: #{fcn_forward.1} parent=1 // pred_check
      _
    $region7: #{fcn_forward.1} parent=1 // pred_check_branch
      %16 = sbr.rel (0) target = $region9
    $region8: #{fcn_forward.1} parent=1 // pred_region
      %s18 = ssub.s32 1024, 1024
      %19 = vsyncadd [#allocation3], %s18
      %s20 = sshll.u32 [#allocation2], 4
      %s21 = int_to_ptr.vmem [resolvable:$true] %s20
      %26 = dma.hbm_to_vmem [thread:$0]  %s1, 1024, %s21, [#allocation3], 64, 64, 4
    $region9: #{fcn_forward.1} parent=1 // pred_fallthru
      _
    // Predicated region
    $region10: #{fcn_forward.1} parent=1 // pred_check
      _
    $region11: #{fcn_forward.1} parent=1 // pred_check_branch
      %28 = sbr.rel (0) target = $region13
    $region12: #{fcn_forward.1} parent=1 // pred_region
      _
    $region13: #{fcn_forward.1} parent=1 // pred_fallthru
      _
    // Predicated region
    $region14: #{fcn_forward.1} parent=1 // pred_check
      _
    $region15: #{fcn_forward.1} parent=1 // pred_check_branch
      %30 = sbr.rel (0) target = $region17
    $region16: #{fcn_forward.1} parent=1 // pred_region
      %s32 = ssub.s32 1024, 1024
      %33 = vsyncadd [#allocation6], %s32
      %s34 = sshll.u32 [#allocation5], 4
      %s35 = int_to_ptr.vmem [resolvable:$true] %s34
      %40 = dma.hbm_to_vmem [thread:$0]  %s3, 1024, %s35, [#allocation6], 64, 64, 4
    $region17: #{fcn_forward.1} parent=1 // pred_fallthru
      _
    // Predicated region
    $region18: #{fcn_forward.1} parent=1 // pred_check
      _
    $region19: #{fcn_forward.1} parent=1 // pred_check_branch
      %42 = sbr.rel (0) target = $region21
    $region20: #{fcn_forward.1} parent=1 // pred_region
      _
    $region21: #{fcn_forward.1} parent=1 // pred_fallthru
      _
    // Predicated region
    $region22: #{fcn_forward.1} parent=1 // pred_check
      _
    $region23: #{fcn_forward.1} parent=1 // pred_check_branch
      %44 = sbr.rel (0) target = $region25
    $region24: #{fcn_forward.1} parent=1 // pred_region
      %45 = dma.done [#allocation3], 1024
    $region25: #{fcn_forward.1} parent=1 // pred_fallthru
      _
    // Predicated region
    $region26: #{fcn_forward.1} parent=1 // pred_check
      _
    $region27: #{fcn_forward.1} parent=1 // pred_check_branch
      %47 = sbr.rel (0) target = $region29
    $region28: #{fcn_forward.1} parent=1 // pred_region
      %48 = dma.done [#allocation6], 1024
    $region29: #{fcn_forward.1} parent=1 // pred_fallthru
      _
    %v50 = vld [vmem:[%s0] sm:$0xff]
    %v51 = vpack.c.bf16 %v50, %v50
    %v52 = vld [vmem:[#allocation2] sm:$0xf]
    %v53 = vld [vmem:[#allocation2 + $0x4] sm:$0xf]
    %v54 = vld [vmem:[#allocation2 + $0x8] sm:$0xf]
    %v55 = vld [vmem:[#allocation2 + $0xc] sm:$0xf]
    %v56 = vld [vmem:[#allocation2 + $0x10] sm:$0xf]
    %v57 = vld [vmem:[#allocation2 + $0x14] sm:$0xf]
    %v58 = vld [vmem:[#allocation2 + $0x18] sm:$0xf]
    %v59 = vld [vmem:[#allocation2 + $0x1c] sm:$0xf]
    %v60 = vld [vmem:[#allocation2 + $0x20] sm:$0xf]
    %v61 = vld [vmem:[#allocation2 + $0x24] sm:$0xf]
    %v62 = vld [vmem:[#allocation2 + $0x28] sm:$0xf]
    %v63 = vld [vmem:[#allocation2 + $0x2c] sm:$0xf]
    %v64 = vld [vmem:[#allocation2 + $0x30] sm:$0xf]
    %v65 = vld [vmem:[#allocation2 + $0x34] sm:$0xf]
    %v66 = vld [vmem:[#allocation2 + $0x38] sm:$0xf]
    %v67 = vld [vmem:[#allocation2 + $0x3c] sm:$0xf]
    %v68 = vld [vmem:[%s2] sm:$0x1]
    %v70 = vlaneseq
    %v71 = vshrl.u32 %v70, 7
    %v72 = vsub.s32 0, %v71
    %v73 = vrot.slane %v68, %v72
    %v91 = vunpack.c.l.b16 %v52
    %v92 = vunpack.c.l.b16 %v53
    %v93 = vunpack.c.l.b16 %v54
    %v94 = vunpack.c.l.b16 %v55
    %v95 = vunpack.c.l.b16 %v56
    %v96 = vunpack.c.l.b16 %v57
    %v97 = vunpack.c.l.b16 %v58
    %v98 = vunpack.c.l.b16 %v59
    %v99 = vunpack.c.l.b16 %v60
    %v100 = vunpack.c.l.b16 %v61
    %v101 = vunpack.c.l.b16 %v62
    %v102 = vunpack.c.l.b16 %v63
    %v103 = vunpack.c.l.b16 %v64
    %v104 = vunpack.c.l.b16 %v65
    %v105 = vunpack.c.l.b16 %v66
    %v106 = vunpack.c.l.b16 %v67
    %v107 = vpack.c.b16 %v92, %v91
    %v108 = vpack.c.b16 %v94, %v93
    %v109 = vpack.c.b16 %v96, %v95
    %v110 = vpack.c.b16 %v98, %v97
    %v111 = vpack.c.b16 %v100, %v99
    %v112 = vpack.c.b16 %v102, %v101
    %v113 = vpack.c.b16 %v104, %v103
    %v114 = vpack.c.b16 %v106, %v105
    %123 = vmatprep.subr.bf16.mxu0 0
    %124 = vmatpush1.bf16.msra.mxu0 %v107
    %125 = vmatprep.subr.bf16.mxu0 0
    %126 = vmatpush1.bf16.msra.mxu0 %v108
    %127 = vmatprep.subr.bf16.mxu0 0
    %128 = vmatpush1.bf16.msra.mxu0 %v109
    %129 = vmatprep.subr.bf16.mxu0 0
    %130 = vmatpush1.bf16.msra.mxu0 %v110
    %131 = vmatprep.subr.bf16.mxu0 0
    %132 = vmatpush1.bf16.msra.mxu0 %v111
    %133 = vmatprep.subr.bf16.mxu0 0
    %134 = vmatpush1.bf16.msra.mxu0 %v112
    %135 = vmatprep.subr.bf16.mxu0 0
    %136 = vmatpush1.bf16.msra.mxu0 %v113
    %137 = vmatprep.subr.bf16.mxu0 0
    %138 = vmatpush1.bf16.msra.mxu0 %v114
    %139 = vmatprep.subr.bf16.mxu0 0
    %140 = vmatpush1.bf16.msra.mxu0 0
    %141 = vmatprep.subr.bf16.mxu0 0
    %142 = vmatpush1.bf16.msra.mxu0 0
    %143 = vmatprep.subr.bf16.mxu0 0
    %144 = vmatpush1.bf16.msra.mxu0 0
    %145 = vmatprep.subr.bf16.mxu0 0
    %146 = vmatpush1.bf16.msra.mxu0 0
    %147 = vmatprep.subr.bf16.mxu0 0
    %148 = vmatpush1.bf16.msra.mxu0 0
    %149 = vmatprep.subr.bf16.mxu0 0
    %150 = vmatpush1.bf16.msra.mxu0 0
    %151 = vmatprep.subr.bf16.mxu0 0
    %152 = vmatpush1.bf16.msra.mxu0 0
    %153 = vmatprep.subr.bf16.mxu0 0
    %154 = vmatpush1.bf16.msra.mxu0 0
    %155 = vmatprep.mubr.bf16.mxu0 0
    %156 = vmatmul.mubr.bf16.gmra.mrb[0].mxu0 %v51
    %v157 = vpop.f32.mrb[0].mxu0
    %v158 = vadd.f32 %v73, %v157
    %v159 = vpop.f32.mrb[0].mxu0
    %v160 = vpop.f32.mrb[0].mxu0
    %v161 = vpop.f32.mrb[0].mxu0
    %162 = vdwg.mxu0
    %v163 = vmax.f32 %v158, 0.0
    %v164 = vpack.c.bf16 %v163, %v163
    %v165 = vld [vmem:[#allocation5] sm:$0xf]
    %v166 = vld [vmem:[#allocation5 + $0x4] sm:$0xf]
    %v167 = vld [vmem:[#allocation5 + $0x8] sm:$0xf]
    %v168 = vld [vmem:[#allocation5 + $0xc] sm:$0xf]
    %v169 = vld [vmem:[#allocation5 + $0x10] sm:$0xf]
    %v170 = vld [vmem:[#allocation5 + $0x14] sm:$0xf]
    %v171 = vld [vmem:[#allocation5 + $0x18] sm:$0xf]
    %v172 = vld [vmem:[#allocation5 + $0x1c] sm:$0xf]
    %v173 = vld [vmem:[#allocation5 + $0x20] sm:$0xf]
    %v174 = vld [vmem:[#allocation5 + $0x24] sm:$0xf]
    %v175 = vld [vmem:[#allocation5 + $0x28] sm:$0xf]
    %v176 = vld [vmem:[#allocation5 + $0x2c] sm:$0xf]
    %v177 = vld [vmem:[#allocation5 + $0x30] sm:$0xf]
    %v178 = vld [vmem:[#allocation5 + $0x34] sm:$0xf]
    %v179 = vld [vmem:[#allocation5 + $0x38] sm:$0xf]
    %v180 = vld [vmem:[#allocation5 + $0x3c] sm:$0xf]
    %v181 = vld [vmem:[%s4] sm:$0x1]
    %v183 = vlaneseq
    %v184 = vshrl.u32 %v183, 7
    %v185 = vsub.s32 0, %v184
    %v186 = vrot.slane %v181, %v185
    %v204 = vunpack.c.l.b16 %v165
    %v205 = vunpack.c.l.b16 %v166
    %v206 = vunpack.c.l.b16 %v167
    %v207 = vunpack.c.l.b16 %v168
    %v208 = vunpack.c.l.b16 %v169
    %v209 = vunpack.c.l.b16 %v170
    %v210 = vunpack.c.l.b16 %v171
    %v211 = vunpack.c.l.b16 %v172
    %v212 = vunpack.c.l.b16 %v173
    %v213 = vunpack.c.l.b16 %v174
    %v214 = vunpack.c.l.b16 %v175
    %v215 = vunpack.c.l.b16 %v176
    %v216 = vunpack.c.l.b16 %v177
    %v217 = vunpack.c.l.b16 %v178
    %v218 = vunpack.c.l.b16 %v179
    %v219 = vunpack.c.l.b16 %v180
    %v220 = vpack.c.b16 %v205, %v204
    %v221 = vpack.c.b16 %v207, %v206
    %v222 = vpack.c.b16 %v209, %v208
    %v223 = vpack.c.b16 %v211, %v210
    %v224 = vpack.c.b16 %v213, %v212
    %v225 = vpack.c.b16 %v215, %v214
    %v226 = vpack.c.b16 %v217, %v216
    %v227 = vpack.c.b16 %v219, %v218
    %236 = vmatprep.subr.bf16.mxu0 0
    %237 = vmatpush1.bf16.msra.mxu0 %v220
    %238 = vmatprep.subr.bf16.mxu0 0
    %239 = vmatpush1.bf16.msra.mxu0 %v221
    %240 = vmatprep.subr.bf16.mxu0 0
    %241 = vmatpush1.bf16.msra.mxu0 %v222
    %242 = vmatprep.subr.bf16.mxu0 0
    %243 = vmatpush1.bf16.msra.mxu0 %v223
    %244 = vmatprep.subr.bf16.mxu0 0
    %245 = vmatpush1.bf16.msra.mxu0 %v224
    %246 = vmatprep.subr.bf16.mxu0 0
    %247 = vmatpush1.bf16.msra.mxu0 %v225
    %248 = vmatprep.subr.bf16.mxu0 0
    %249 = vmatpush1.bf16.msra.mxu0 %v226
    %250 = vmatprep.subr.bf16.mxu0 0
    %251 = vmatpush1.bf16.msra.mxu0 %v227
    %252 = vmatprep.subr.bf16.mxu0 0
    %253 = vmatpush1.bf16.msra.mxu0 0
    %254 = vmatprep.subr.bf16.mxu0 0
    %255 = vmatpush1.bf16.msra.mxu0 0
    %256 = vmatprep.subr.bf16.mxu0 0
    %257 = vmatpush1.bf16.msra.mxu0 0
    %258 = vmatprep.subr.bf16.mxu0 0
    %259 = vmatpush1.bf16.msra.mxu0 0
    %260 = vmatprep.subr.bf16.mxu0 0
    %261 = vmatpush1.bf16.msra.mxu0 0
    %262 = vmatprep.subr.bf16.mxu0 0
    %263 = vmatpush1.bf16.msra.mxu0 0
    %264 = vmatprep.subr.bf16.mxu0 0
    %265 = vmatpush1.bf16.msra.mxu0 0
    %266 = vmatprep.subr.bf16.mxu0 0
    %267 = vmatpush1.bf16.msra.mxu0 0
    %268 = vmatprep.mubr.bf16.mxu0 0
    %269 = vmatmul.mubr.bf16.gmra.mrb[0].mxu0 %v164
    %v270 = vpop.f32.mrb[0].mxu0
    %v271 = vadd.f32 %v186, %v270
    %v272 = vpop.f32.mrb[0].mxu0
    %v273 = vpop.f32.mrb[0].mxu0
    %v274 = vpop.f32.mrb[0].mxu0
    %275 = vdwg.mxu0
    %v276 = vxor.u32 %v271, 2147483648
    %v277 = vmul.f32 %v276, 1.442695
    %v278 = vpow.pop %v277
    %v279 = vadd.f32 %v278, 1.0
    %v280 = vrcp.pop %v279
    %v281 = vmul.f32 1.0, %v280
    %282 = vst [vmem:[#allocation7] sm:$0xff] %v281
    // Predicated region
    $region30: #{fcn_forward.1} parent=1 // pred_check
      _
    $region31: #{fcn_forward.1} parent=1 // pred_check_branch
      %284 = sbr.rel (0) target = $region33
    $region32: #{fcn_forward.1} parent=1 // pred_region
      %s286 = ssub.s32 128, 128
      %287 = vsyncadd [#allocation4], %s286
      %s289 = sshll.u32 [#allocation7], 4
      %s290 = int_to_ptr.vmem [resolvable:$true] %s289
      %292 = dma.vmem_to_hbm [thread:$0]  %s290, 128, %s5, [#allocation4]
    $region33: #{fcn_forward.1} parent=1 // pred_fallthru
      _
    // Predicated region
    $region34: #{fcn_forward.1} parent=1 // pred_check
      _
    $region35: #{fcn_forward.1} parent=1 // pred_check_branch
      %294 = sbr.rel (0) target = $region37
    $region36: #{fcn_forward.1} parent=1 // pred_region
      %295 = dma.done [#allocation4], 128
    $region37: #{fcn_forward.1} parent=1 // pred_fallthru
      _
    %296 = vsyncpa [#allocation3], 1
    %297 = vsyncpa [#allocation6], 1
    %298 = vsyncpa [#allocation4], 1

</llo_original>
